<compile_context>
chip_gen: v5e
topology: v5e:2x2
jax: 0.10.0
libtpu: 0.0.40
codegen_flags: <defaults>
</compile_context>

<pallas_src>
import jax
import jax.numpy as jnp
from jax.experimental import pallas as pl
from jax.experimental.pallas import tpu as pltpu

IN_F, HID_F, OUT_F = 2, 10, 1

LANES = 128
ROWS_PER_VROW = LANES // IN_F       # 64 batch rows per lane-dense view row
OUT_COLS = ROWS_PER_VROW            # 64 results per view row

_TR_MAX = 8192       # view rows per tile: 8192*128*4 B = 4 MiB input block
_MIN_GRID = 4        # aim for >=4 grid steps (pipelining + v7x megacore)
_SMALL_BATCH = 1024  # below this, dispatch overhead beats the kernel.
                     # TODO(synk): re-measure the Pallas-vs-fused-XLA crossover.


def _affine_kernel(b_ref, p_ref, x_ref, o_ref):
    # b_ref : SMEM f32[1]        folded bias (resident across all grid steps)
    # p_ref : VMEM f32[128,64]   two-tap selection matrix (fetched once)
    # x_ref : VMEM f32[TR,128]   lane-dense tile: lanes = [x0,x1,x0,x1,...]
    # o_ref : VMEM f32[TR,64]    dense results, o[r,k] = y[64*r + k]
    o_ref[...] = (
        jnp.dot(x_ref[...], p_ref[...],
                preferred_element_type=jnp.float32,
                precision=jax.lax.Precision.HIGHEST)
        + b_ref[0]
    )


def fold_params(params):
    """Fold the 3 affine layers into one map (done once per set of weights).

    PyTorch convention: w_i is (out, in), per layer y = x @ w.T + b.
    W = W1.T @ W2.T @ W3.T : (2,1);  b = ((b1 @ W2.T)+b2) @ W3.T + b3 : (1,).

    Also builds P (128,64) with P[2k,k]=W[0,0], P[2k+1,k]=W[1,0] so that for
    the zero-copy view xv = x.reshape(-1,128) (even lane = x[:,0], odd = x[:,1]):
        (xv @ P)[r, k] = x[64r+k, 0]*W[0,0] + x[64r+k, 1]*W[1,0].
    """
    w1t, w2t, w3t = params["w1"].T, params["w2"].T, params["w3"].T
    w = (w1t @ w2t @ w3t).astype(jnp.float32)                                 # (2,1)
    b = ((params["b1"] @ w2t + params["b2"]) @ w3t
         + params["b3"]).astype(jnp.float32)                                  # (1,)
    rows = jnp.arange(LANES)[:, None]        # (128,1)
    cols = jnp.arange(OUT_COLS)[None, :]     # (1,64)
    p = (jnp.where(rows == IN_F * cols, w[0, 0], 0.0)
         + jnp.where(rows == IN_F * cols + 1, w[1, 0], 0.0)).astype(jnp.float32)
    return {"w": w, "b": b, "p": p}


def _tile_rows(m):
    """View rows per tile: big for amortization, >=_MIN_GRID steps when possible."""
    tr = min(_TR_MAX, max(1, -(-m // _MIN_GRID)))
    return max(8, ((tr + 7) // 8) * 8)       # sublane tiles are 8 rows


@jax.jit
def circle_model_v2(x, folded):
    """x: (N, 2) float32; folded: output of fold_params. Returns (N, 1) float32."""
    n = x.shape[0]
    w, b, p = folded["w"], folded["b"], folded["p"]

    def xla_affine(xs):                      # fallback / tail path (same math)
        return xs @ w + b

    n_main = (n // ROWS_PER_VROW) * ROWS_PER_VROW
    if n < _SMALL_BATCH or n_main == 0:
        return xla_affine(x)

    m = n_main // ROWS_PER_VROW              # lane-dense view rows
    tr = _tile_rows(m)

    # Zero-copy view when n is a multiple of 64 (no pad, no slice of x).
    x_main = x if n_main == n else x[:n_main]
    x_view = x_main.reshape(m, LANES)

    dense = pl.pallas_call(
        _affine_kernel,
        out_shape=jax.ShapeDtypeStruct((m, OUT_COLS), jnp.float32),
        grid=(pl.cdiv(m, tr),),
        in_specs=[
            pl.BlockSpec(memory_space=pltpu.MemorySpace.SMEM),   # b, resident
            pl.BlockSpec((LANES, OUT_COLS), lambda i: (0, 0)),   # P, fetched once
            pl.BlockSpec((tr, LANES), lambda i: (i, 0)),         # x view tile
        ],
        out_specs=pl.BlockSpec((tr, OUT_COLS), lambda i: (i, 0)),
        compiler_params=pltpu.CompilerParams(
            dimension_semantics=("parallel",),     # shard tiles over v7x's 2 TCs
            vmem_limit_bytes=32 * 1024 * 1024,     # v5e scoped default is 16 MiB
        ),
    )(b, p, x_view)

    y_main = dense.reshape(n_main, OUT_F)    # zero-copy: (m*64, 1) == (n_main, 1)

    if n_main == n:
        return y_main
    # Ragged tail (< 64 rows): trivial XLA op, concatenated once.
    return jnp.concatenate([y_main, xla_affine(x[n_main:])], axis=0)


def init_params(key):
    """Deterministic init matching the nn.Linear shapes of CircleModelV2."""
    k1, k2, k3, k4, k5, k6 = jax.random.split(key, 6)
    # PyTorch convention: weight is (out_features, in_features).
    return {
        "w1": jax.random.normal(k1, (HID_F, IN_F), jnp.float32) * 0.5,
        "b1": jax.random.normal(k2, (HID_F,), jnp.float32) * 0.1,
        "w2": jax.random.normal(k3, (HID_F, HID_F), jnp.float32) * 0.5,
        "b2": jax.random.normal(k4, (HID_F,), jnp.float32) * 0.1,
        "w3": jax.random.normal(k5, (OUT_F, HID_F), jnp.float32) * 0.5,
        "b3": jax.random.normal(k6, (OUT_F,), jnp.float32) * 0.1,
    }


if __name__ == "__main__":
    key = jax.random.PRNGKey(0)
    kx1, kx2, kp = jax.random.split(key, 3)

    params = init_params(kp)
    folded = fold_params(params)             # one-time param preprocessing

    def reference(xs):
        h = xs @ params["w1"].T + params["b1"]
        h = h @ params["w2"].T + params["b2"]
        return h @ params["w3"].T + params["b3"]

    # 1) 64/128-aligned batch: fully zero-copy Pallas path, 4 grid steps.
    n1 = 4096
    x1 = jax.random.normal(kx1, (n1, IN_F), jnp.float32)
    y1 = jax.block_until_ready(circle_model_v2(x1, folded))
    assert y1.shape == (n1, OUT_F)
    assert jnp.allclose(y1, reference(x1), atol=1e-3, rtol=1e-3), "mismatch (aligned)"

    # 2) Unaligned batch: kernel on the 64-aligned prefix (ragged last block),
    #    XLA on the 4-row tail.
    n2 = 2500
    x2 = jax.random.normal(kx2, (n2, IN_F), jnp.float32)
    y2 = jax.block_until_ready(circle_model_v2(x2, folded))
    assert y2.shape == (n2, OUT_F)
    assert jnp.allclose(y2, reference(x2), atol=1e-3, rtol=1e-3), "mismatch (ragged)"

    print("KERNEL_OK")
</pallas_src>

<mosaic_0001>
module attributes {stable_mosaic.version = 11 : i64} {
  func.func @_affine_kernel(%arg0: i32, %arg1: memref<1xf32, #tpu.memory_space<smem>>, %arg2: memref<128x64xf32, #tpu.memory_space<vmem>>, %arg3: memref<16x128xf32, #tpu.memory_space<vmem>>, %arg4: memref<16x64xf32, #tpu.memory_space<vmem>>) attributes {dimension_semantics = [#tpu.dimension_semantics<parallel>], iteration_bounds = array<i64: 4>, scalar_prefetch = 0 : i64, scratch_operands = 0 : i64, tpu.core_type = #tpu.core_type<tc>, window_params = [{transform_indices = @transform_0, window_bounds = array<i64: 1>}, {pipeline_mode = #tpu.pipeline_mode<synchronous>, transform_indices = @transform_1, window_bounds = array<i64: 128, 64>}, {transform_indices = @transform_2, window_bounds = array<i64: 16, 128>}, {transform_indices = @transform_3, window_bounds = array<i64: 16, 64>}]} {
    %c0 = arith.constant 0 : index
    %c0_0 = arith.constant 0 : index
    %0 = vector.load %arg3[%c0, %c0_0] : memref<16x128xf32, #tpu.memory_space<vmem>>, vector<16x128xf32>
    %c0_1 = arith.constant 0 : index
    %c0_2 = arith.constant 0 : index
    %1 = vector.load %arg2[%c0_1, %c0_2] : memref<128x64xf32, #tpu.memory_space<vmem>>, vector<128x64xf32>
    %cst = arith.constant dense<0.000000e+00> : vector<16x64xf32>
    %2 = tpu.matmul %0, %1, %cst {dimension_numbers = #tpu.dot_dimension_numbers<[1], [0], [0], [1], [0, 0, 1, 1], [], []>, precision = #tpu.contract_precision<fp32>} : vector<16x128xf32>, vector<128x64xf32>, vector<16x64xf32> -> vector<16x64xf32>
    %c0_3 = arith.constant 0 : index
    %3 = memref.load %arg1[%c0_3] : memref<1xf32, #tpu.memory_space<smem>>
    %4 = vector.broadcast %3 : f32 to vector<16x64xf32>
    %5 = arith.addf %2, %4 : vector<16x64xf32>
    %c0_4 = arith.constant 0 : index
    %c0_5 = arith.constant 0 : index
    %6 = vector.load %arg4[%c0_4, %c0_5] : memref<16x64xf32, #tpu.memory_space<vmem>>, vector<16x64xf32>
    tpu.vector_store %arg4[%c0_4, %c0_5], %5 {strides = array<i32>} : memref<16x64xf32, #tpu.memory_space<vmem>>, vector<16x64xf32>,
    return
  }
  func.func @transform_0(%arg0: i32) -> i32 {
    %c0_i32 = arith.constant 0 : i32
    %c0_i32_0 = arith.constant 0 : i32
    return %c0_i32 : i32
  }
  func.func @transform_1(%arg0: i32) -> (i32, i32) {
    %c0_i32 = arith.constant 0 : i32
    %c0_i32_0 = arith.constant 0 : i32
    %c0_i32_1 = arith.constant 0 : i32
    return %c0_i32, %c0_i32_0 : i32, i32
  }
  func.func @transform_2(%arg0: i32) -> (i32, i32) {
    %c0_i32 = arith.constant 0 : i32
    %c0_i32_0 = arith.constant 0 : i32
    return %arg0, %c0_i32 : i32, i32
  }
  func.func @transform_3(%arg0: i32) -> (i32, i32) {
    %c0_i32 = arith.constant 0 : i32
    %c0_i32_0 = arith.constant 0 : i32
    return %arg0, %c0_i32 : i32, i32
  }
}

</mosaic_0001>

<llo_original>
// kernel: circle_model_v2.1
$region0: #{circle_model_v2.1}
  #allocation0 [shape = 'u32[]', space=smem, size = 0x4, offset = 0x4, fixed_abs, tag = 'smem constant byte address 0x4 - core index']
  #allocation1 [shape = 'u32[72,128]{1,0:T(1,128)}', space=vmem, size = 0x9000, scoped, tag = 'internal scratch']
  #allocation2 [shape = 'f32[1]{0:T(128)S(6)}', space=smem, size = 0x200, scoped, tag = 'scoped memory for circle_model_v2.1']
  %s0 = inlined_call_operand.<no memory space> [shape: f32[1], index: 0, kind: input, shape index: {}]
  %s1 = inlined_call_operand.vmem [shape: f32[128,64], index: 1, kind: input, shape index: {}]
  %s2 = inlined_call_operand.vmem [shape: f32[64,128], index: 2, kind: input, shape index: {}]
  %s3 = inlined_call_operand.vmem [shape: f32[64,64], index: 3, kind: output, shape index: {}]
  %s4 = sld [smem:[#allocation0]]
  $region45: #{circle_model_v2.1} parent=0
    _
  %s6 = ssub.s32 1, %s4
  %s7 = scalar_select 0, %s6, %s4
  %8 = sst [smem:[#allocation2]] %s0
  loop: start=0, step=1, limit=6
  $region2: #{circle_model_v2.1} parent=0 // loop_pre_header
    _
  $region3: #{circle_model_v2.1} parent=0 // loop_header
    %s10 = sphi 0, %s14
    %p11 = scmp.ge.s32.totalorder %s10, 6
    %s18 = sphi 0, %s18
    %s20 = sphi 0, %s18
    %s21 = sphi 0, %s20
    %s35 = sphi 0, %s21
    %s39 = sphi 0, %s39
    %s41 = sphi 0, %s39
    %s42 = sphi 0, %s41
    %s56 = sphi 0, %s42
    %s62 = sphi 0, %s64
    %s65 = sphi 0, %s62
    %s66 = sphi 0, %s65
    %s82 = sphi 0, %s66
    %s88 = sphi 0, %s90
    %s91 = sphi 0, %s88
    %s92 = sphi 0, %s91
    %s108 = sphi 0, %s92
  $region4: #{circle_model_v2.1} parent=0 // loop_header_branch
    %13 = sbr.rel (%p11) target = $region8
  $region5: #{circle_model_v2.1} parent=0 // loop_body
    %s15 = ssub.s32 %s10, 1
    %s16 = ssub.s32 %s10, 2
    %s17 = sadd.s32 %s10, 1
    %s19 = sadd.s32 %s18, 1
    %p22 = scmp.eq.s32.totalorder %s10, 3
    %p23 = scmp.ne.s32.totalorder %s18, %s20
    %p24 = scmp.eq.s32.totalorder %s10, 0
    %p25 = por %p23, %p24
    %p26 = scmp.ne.s32.totalorder %s18, %s20
    %p27 = scmp.eq.s32.totalorder %s15, 3
    %p28 = por %p26, %p27
    %p29 = scmp.ne.s32.totalorder %s20, %s21
    %p30 = scmp.eq.s32.totalorder %s15, 0
    %p31 = por %p29, %p30
    %p32 = scmp.ne.s32.totalorder %s20, %s21
    %p33 = scmp.eq.s32.totalorder %s16, 3
    %p34 = por %p32, %p33
    %p36 = scmp.ne.s32.totalorder %s21, %s35
    %p37 = scmp.eq.s32.totalorder %s16, 0
    %p38 = por %p36, %p37
    %s40 = sadd.s32 %s39, 1
    %p43 = scmp.eq.s32.totalorder %s10, 3
    %p44 = scmp.ne.s32.totalorder %s39, %s41
    %p45 = scmp.eq.s32.totalorder %s10, 0
    %p46 = por %p44, %p45
    %p47 = scmp.ne.s32.totalorder %s39, %s41
    %p48 = scmp.eq.s32.totalorder %s15, 3
    %p49 = por %p47, %p48
    %p50 = scmp.ne.s32.totalorder %s41, %s42
    %p51 = scmp.eq.s32.totalorder %s15, 0
    %p52 = por %p50, %p51
    %p53 = scmp.ne.s32.totalorder %s41, %s42
    %p54 = scmp.eq.s32.totalorder %s16, 3
    %p55 = por %p53, %p54
    %p57 = scmp.ne.s32.totalorder %s42, %s56
    %p58 = scmp.eq.s32.totalorder %s16, 0
    %p59 = por %p57, %p58
    %s60 = ssub.s32 %s10, %s17
    %p61 = scmp.eq.s32.totalorder %s60, 0
    %s63 = sadd.s32 %s62, 1
    %s64 = scalar_select %p61, %s62, %s63
    %p67 = pneg %p61
    %p68 = scmp.eq.s32.totalorder %s10, 3
    %p69 = por %p67, %p68
    %p70 = scmp.ne.s32.totalorder %s62, %s65
    %p71 = scmp.eq.s32.totalorder %s10, 0
    %p72 = por %p70, %p71
    %p73 = scmp.ne.s32.totalorder %s62, %s65
    %p74 = scmp.eq.s32.totalorder %s15, 3
    %p75 = por %p73, %p74
    %p76 = scmp.ne.s32.totalorder %s65, %s66
    %p77 = scmp.eq.s32.totalorder %s15, 0
    %p78 = por %p76, %p77
    %p79 = scmp.ne.s32.totalorder %s65, %s66
    %p80 = scmp.eq.s32.totalorder %s16, 3
    %p81 = por %p79, %p80
    %p83 = scmp.ne.s32.totalorder %s66, %s82
    %p84 = scmp.eq.s32.totalorder %s16, 0
    %p85 = por %p83, %p84
    %s86 = ssub.s32 %s10, %s17
    %p87 = scmp.eq.s32.totalorder %s86, 0
    %s89 = sadd.s32 %s88, 1
    %s90 = scalar_select %p87, %s88, %s89
    %p93 = pneg %p87
    %p94 = scmp.eq.s32.totalorder %s10, 3
    %p95 = por %p93, %p94
    %p96 = scmp.ne.s32.totalorder %s88, %s91
    %p97 = scmp.eq.s32.totalorder %s10, 0
    %p98 = por %p96, %p97
    %p99 = scmp.ne.s32.totalorder %s88, %s91
    %p100 = scmp.eq.s32.totalorder %s15, 3
    %p101 = por %p99, %p100
    %p102 = scmp.ne.s32.totalorder %s91, %s92
    %p103 = scmp.eq.s32.totalorder %s15, 0
    %p104 = por %p102, %p103
    %p105 = scmp.ne.s32.totalorder %s91, %s92
    %p106 = scmp.eq.s32.totalorder %s16, 3
    %p107 = por %p105, %p106
    %p109 = scmp.ne.s32.totalorder %s92, %s108
    %p110 = scmp.eq.s32.totalorder %s16, 0
    %p111 = por %p109, %p110
    %p112 = scmp.le.s32.totalorder 1, %s10
    %p113 = scmp.lt.s32.totalorder %s10, 5
    %p114 = pnand %p112, %p113
    %p115 = pneg %p114
    // Predicated region
    $region9: #{circle_model_v2.1} parent=5 // pred_check
      _
    $region10: #{circle_model_v2.1} parent=5 // pred_check_branch
      %117 = sbr.rel (%p114) target = $region12
    $region11: #{circle_model_v2.1} parent=5 // pred_region
      %s118 = ssub.s32 %s10, 1
      // Predicated region
      $region13: #{circle_model_v2.1} parent=11 // pred_check
        %p119 = pneg %p31
      $region14: #{circle_model_v2.1} parent=11 // pred_check_branch
        %121 = sbr.rel (%p119) target = $region16
      $region15: #{circle_model_v2.1} parent=11 // pred_region
        _
      $region16: #{circle_model_v2.1} parent=11 // pred_fallthru
        _
      // Predicated region
      $region17: #{circle_model_v2.1} parent=11 // pred_check
        %p122 = pneg %p52
      $region18: #{circle_model_v2.1} parent=11 // pred_check_branch
        %124 = sbr.rel (%p122) target = $region20
      $region19: #{circle_model_v2.1} parent=11 // pred_region
        _
      $region20: #{circle_model_v2.1} parent=11 // pred_fallthru
        _
    $region12: #{circle_model_v2.1} parent=5 // pred_fallthru
      _
    %p125 = scmp.lt.s32.totalorder %s10, 4
    // Predicated region
    $region21: #{circle_model_v2.1} parent=5 // pred_check
      %p126 = pneg %p125
    $region22: #{circle_model_v2.1} parent=5 // pred_check_branch
      %128 = sbr.rel (%p126) target = $region24
    $region23: #{circle_model_v2.1} parent=5 // pred_region
      // Predicated region
      $region25: #{circle_model_v2.1} parent=23 // pred_check
        %p129 = pneg %p72
      $region26: #{circle_model_v2.1} parent=23 // pred_check_branch
        %131 = sbr.rel (%p129) target = $region28
      $region27: #{circle_model_v2.1} parent=23 // pred_region
        %s132 = smul.u32 2, %s10
        %p133 = scmp.lt.s32.totalorder %s132, 7
        %s134 = scalar_select %p133, %s132, 7
        %s135 = smul.addr %s134, 8
        %s136 = scalar_lea.vmem %s2, %s135
        %s137 = smul.u32 2, %s10
      $region28: #{circle_model_v2.1} parent=23 // pred_fallthru
        _
    $region24: #{circle_model_v2.1} parent=5 // pred_fallthru
      _
    %p138 = scmp.le.s32.totalorder 1, %s10
    %p139 = scmp.lt.s32.totalorder %s10, 5
    %p140 = pnand %p138, %p139
    %p141 = pneg %p140
    // Predicated region
    $region29: #{circle_model_v2.1} parent=5 // pred_check
      _
    $region30: #{circle_model_v2.1} parent=5 // pred_check_branch
      %143 = sbr.rel (%p140) target = $region32
    $region31: #{circle_model_v2.1} parent=5 // pred_region
      %s144 = ssub.s32 %s10, 1
      %p145 = pneg %p31
      %p146 = pneg %p28
      %p147 = pneg %p52
      %p148 = pneg %p49
      %s149 = smul.u32 2, %s15
      %p150 = scmp.lt.s32.totalorder %s149, 7
      %s151 = scalar_select %p150, %s149, 7
      %s152 = smul.addr %s151, 8
      %s153 = scalar_lea.vmem %s2, %s152
      %p154 = pneg %p78
      %p155 = pneg %p75
      %p156 = pneg %p104
      %p157 = pneg %p101
      %s158 = smul.u32 2, %s15
      %p159 = scmp.lt.s32.totalorder %s158, 7
      %s160 = scalar_select %p159, %s158, 7
      %s161 = smul.addr %s160, 8
      %s162 = scalar_lea.vmem %s3, %s161
      %s163 = smul.u32 2, %s15
      %p164 = scmp.lt.s32.totalorder %s163, 7
      %s165 = scalar_select %p164, %s163, 7
      %s166 = smul.addr %s165, 8
      %s167 = scalar_lea.vmem %s2, %s166
      %s168 = smul.u32 2, %s15
      %s169 = smul.u32 2, %s15
      %p170 = scmp.lt.s32.totalorder %s169, 7
      %s171 = scalar_select %p170, %s169, 7
      %s172 = smul.addr %s171, 8
      %s173 = scalar_lea.vmem %s3, %s172
      %s174 = smul.u32 2, %s15
      %v175 = vld [vmem:[%s167] sm:$0xff]
      %v176 = vld [vmem:[%s167 + $0x8] sm:$0xff]
      %v177 = vld [vmem:[%s1] sm:$0xff]
      %v178 = vld [vmem:[%s1 + $0x8] sm:$0xff]
      %v179 = vld [vmem:[%s1 + $0x10] sm:$0xff]
      %v180 = vld [vmem:[%s1 + $0x18] sm:$0xff]
      %v181 = vld [vmem:[%s1 + $0x20] sm:$0xff]
      %v182 = vld [vmem:[%s1 + $0x28] sm:$0xff]
      %v183 = vld [vmem:[%s1 + $0x30] sm:$0xff]
      %v184 = vld [vmem:[%s1 + $0x38] sm:$0xff]
      %v185 = vld [vmem:[%s1 + $0x40] sm:$0xff]
      %v186 = vld [vmem:[%s1 + $0x48] sm:$0xff]
      %v187 = vld [vmem:[%s1 + $0x50] sm:$0xff]
      %v188 = vld [vmem:[%s1 + $0x58] sm:$0xff]
      %v189 = vld [vmem:[%s1 + $0x60] sm:$0xff]
      %v190 = vld [vmem:[%s1 + $0x68] sm:$0xff]
      %v191 = vld [vmem:[%s1 + $0x70] sm:$0xff]
      %v192 = vld [vmem:[%s1 + $0x78] sm:$0xff]
      %s193 = sld [smem:[#allocation2]]
      %v194 = vstv %s193
      %v195 = vand.u32 %v192, 4294901760
      %196 = vmatpush.msra.mxu0 %v195
      %v197 = vand.u32 %v191, 4294901760
      %198 = vmatpush.msra.mxu0 %v197
      %v199 = vand.u32 %v190, 4294901760
      %200 = vmatpush.msra.mxu0 %v199
      %v201 = vand.u32 %v189, 4294901760
      %202 = vmatpush.msra.mxu0 %v201
      %v203 = vand.u32 %v188, 4294901760
      %204 = vmatpush.msra.mxu0 %v203
      %v205 = vand.u32 %v187, 4294901760
      %206 = vmatpush.msra.mxu0 %v205
      %v207 = vand.u32 %v186, 4294901760
      %208 = vmatpush.msra.mxu0 %v207
      %v209 = vand.u32 %v185, 4294901760
      %210 = vmatpush.msra.mxu0 %v209
      %v211 = vand.u32 %v184, 4294901760
      %212 = vmatpush.msra.mxu0 %v211
      %v213 = vand.u32 %v183, 4294901760
      %214 = vmatpush.msra.mxu0 %v213
      %v215 = vand.u32 %v182, 4294901760
      %216 = vmatpush.msra.mxu0 %v215
      %v217 = vand.u32 %v181, 4294901760
      %218 = vmatpush.msra.mxu0 %v217
      %v219 = vand.u32 %v180, 4294901760
      %220 = vmatpush.msra.mxu0 %v219
      %v221 = vand.u32 %v179, 4294901760
      %222 = vmatpush.msra.mxu0 %v221
      %v223 = vand.u32 %v178, 4294901760
      %224 = vmatpush.msra.mxu0 %v223
      %v225 = vand.u32 %v177, 4294901760
      %226 = vmatpush.msra.mxu0 %v225
      %v227 = vand.u32 %v175, 4294901760
      %v228 = vsub.f32 %v175, %v227
      %v229 = vand.u32 %v228, 4294901760
      %v230 = vsub.f32 %v228, %v229
      %v231 = vand.u32 %v230, 4294901760
      %232 = vmatmul.f32.gmra.mxu0 %v231
      %v233 = vpop.f32.mrf.mxu0
      %v234 = vadd.f32 %v194, %v233
      %v235 = vand.u32 %v176, 4294901760
      %v236 = vsub.f32 %v176, %v235
      %v237 = vand.u32 %v236, 4294901760
      %v238 = vsub.f32 %v236, %v237
      %v239 = vand.u32 %v238, 4294901760
      %240 = vmatmul.f32.gmra.mxu0 %v239
      %v241 = vpop.f32.mrf.mxu0
      %v242 = vadd.f32 %v194, %v241
      %243 = vdwg.mxu0
      %v244 = vand.u32 %v192, 4294901760
      %v245 = vsub.f32 %v192, %v244
      %v246 = vand.u32 %v245, 4294901760
      %v247 = vsub.f32 %v245, %v246
      %v248 = vand.u32 %v247, 4294901760
      %249 = vmatpush.msra.mxu0 %v248
      %v250 = vand.u32 %v191, 4294901760
      %v251 = vsub.f32 %v191, %v250
      %v252 = vand.u32 %v251, 4294901760
      %v253 = vsub.f32 %v251, %v252
      %v254 = vand.u32 %v253, 4294901760
      %255 = vmatpush.msra.mxu0 %v254
      %v256 = vand.u32 %v190, 4294901760
      %v257 = vsub.f32 %v190, %v256
      %v258 = vand.u32 %v257, 4294901760
      %v259 = vsub.f32 %v257, %v258
      %v260 = vand.u32 %v259, 4294901760
      %261 = vmatpush.msra.mxu0 %v260
      %v262 = vand.u32 %v189, 4294901760
      %v263 = vsub.f32 %v189, %v262
      %v264 = vand.u32 %v263, 4294901760
      %v265 = vsub.f32 %v263, %v264
      %v266 = vand.u32 %v265, 4294901760
      %267 = vmatpush.msra.mxu0 %v266
      %v268 = vand.u32 %v188, 4294901760
      %v269 = vsub.f32 %v188, %v268
      %v270 = vand.u32 %v269, 4294901760
      %v271 = vsub.f32 %v269, %v270
      %v272 = vand.u32 %v271, 4294901760
      %273 = vmatpush.msra.mxu0 %v272
      %v274 = vand.u32 %v187, 4294901760
      %v275 = vsub.f32 %v187, %v274
      %v276 = vand.u32 %v275, 4294901760
      %v277 = vsub.f32 %v275, %v276
      %v278 = vand.u32 %v277, 4294901760
      %279 = vmatpush.msra.mxu0 %v278
      %v280 = vand.u32 %v186, 4294901760
      %v281 = vsub.f32 %v186, %v280
      %v282 = vand.u32 %v281, 4294901760
      %v283 = vsub.f32 %v281, %v282
      %v284 = vand.u32 %v283, 4294901760
      %285 = vmatpush.msra.mxu0 %v284
      %v286 = vand.u32 %v185, 4294901760
      %v287 = vsub.f32 %v185, %v286
      %v288 = vand.u32 %v287, 4294901760
      %v289 = vsub.f32 %v287, %v288
      %v290 = vand.u32 %v289, 4294901760
      %291 = vmatpush.msra.mxu0 %v290
      %v292 = vand.u32 %v184, 4294901760
      %v293 = vsub.f32 %v184, %v292
      %v294 = vand.u32 %v293, 4294901760
      %v295 = vsub.f32 %v293, %v294
      %v296 = vand.u32 %v295, 4294901760
      %297 = vmatpush.msra.mxu0 %v296
      %v298 = vand.u32 %v183, 4294901760
      %v299 = vsub.f32 %v183, %v298
      %v300 = vand.u32 %v299, 4294901760
      %v301 = vsub.f32 %v299, %v300
      %v302 = vand.u32 %v301, 4294901760
      %303 = vmatpush.msra.mxu0 %v302
      %v304 = vand.u32 %v182, 4294901760
      %v305 = vsub.f32 %v182, %v304
      %v306 = vand.u32 %v305, 4294901760
      %v307 = vsub.f32 %v305, %v306
      %v308 = vand.u32 %v307, 4294901760
      %309 = vmatpush.msra.mxu0 %v308
      %v310 = vand.u32 %v181, 4294901760
      %v311 = vsub.f32 %v181, %v310
      %v312 = vand.u32 %v311, 4294901760
      %v313 = vsub.f32 %v311, %v312
      %v314 = vand.u32 %v313, 4294901760
      %315 = vmatpush.msra.mxu0 %v314
      %v316 = vand.u32 %v180, 4294901760
      %v317 = vsub.f32 %v180, %v316
      %v318 = vand.u32 %v317, 4294901760
      %v319 = vsub.f32 %v317, %v318
      %v320 = vand.u32 %v319, 4294901760
      %321 = vmatpush.msra.mxu0 %v320
      %v322 = vand.u32 %v179, 4294901760
      %v323 = vsub.f32 %v179, %v322
      %v324 = vand.u32 %v323, 4294901760
      %v325 = vsub.f32 %v323, %v324
      %v326 = vand.u32 %v325, 4294901760
      %327 = vmatpush.msra.mxu0 %v326
      %v328 = vand.u32 %v178, 4294901760
      %v329 = vsub.f32 %v178, %v328
      %v330 = vand.u32 %v329, 4294901760
      %v331 = vsub.f32 %v329, %v330
      %v332 = vand.u32 %v331, 4294901760
      %333 = vmatpush.msra.mxu0 %v332
      %v334 = vand.u32 %v177, 4294901760
      %v335 = vsub.f32 %v177, %v334
      %v336 = vand.u32 %v335, 4294901760
      %v337 = vsub.f32 %v335, %v336
      %v338 = vand.u32 %v337, 4294901760
      %339 = vmatpush.msra.mxu0 %v338
      %v340 = vand.u32 %v175, 4294901760
      %341 = vmatmul.f32.gmra.mxu0 %v340
      %v342 = vpop.f32.mrf.mxu0
      %v343 = vadd.f32 %v234, %v342
      %v344 = vand.u32 %v176, 4294901760
      %345 = vmatmul.f32.gmra.mxu0 %v344
      %v346 = vpop.f32.mrf.mxu0
      %v347 = vadd.f32 %v242, %v346
      %348 = vdwg.mxu0
      %v349 = vand.u32 %v192, 4294901760
      %v350 = vsub.f32 %v192, %v349
      %351 = vmatpush.msra.mxu0 %v350
      %v352 = vand.u32 %v191, 4294901760
      %v353 = vsub.f32 %v191, %v352
      %354 = vmatpush.msra.mxu0 %v353
      %v355 = vand.u32 %v190, 4294901760
      %v356 = vsub.f32 %v190, %v355
      %357 = vmatpush.msra.mxu0 %v356
      %v358 = vand.u32 %v189, 4294901760
      %v359 = vsub.f32 %v189, %v358
      %360 = vmatpush.msra.mxu0 %v359
      %v361 = vand.u32 %v188, 4294901760
      %v362 = vsub.f32 %v188, %v361
      %363 = vmatpush.msra.mxu0 %v362
      %v364 = vand.u32 %v187, 4294901760
      %v365 = vsub.f32 %v187, %v364
      %366 = vmatpush.msra.mxu0 %v365
      %v367 = vand.u32 %v186, 4294901760
      %v368 = vsub.f32 %v186, %v367
      %369 = vmatpush.msra.mxu0 %v368
      %v370 = vand.u32 %v185, 4294901760
      %v371 = vsub.f32 %v185, %v370
      %372 = vmatpush.msra.mxu0 %v371
      %v373 = vand.u32 %v184, 4294901760
      %v374 = vsub.f32 %v184, %v373
      %375 = vmatpush.msra.mxu0 %v374
      %v376 = vand.u32 %v183, 4294901760
      %v377 = vsub.f32 %v183, %v376
      %378 = vmatpush.msra.mxu0 %v377
      %v379 = vand.u32 %v182, 4294901760
      %v380 = vsub.f32 %v182, %v379
      %381 = vmatpush.msra.mxu0 %v380
      %v382 = vand.u32 %v181, 4294901760
      %v383 = vsub.f32 %v181, %v382
      %384 = vmatpush.msra.mxu0 %v383
      %v385 = vand.u32 %v180, 4294901760
      %v386 = vsub.f32 %v180, %v385
      %387 = vmatpush.msra.mxu0 %v386
      %v388 = vand.u32 %v179, 4294901760
      %v389 = vsub.f32 %v179, %v388
      %390 = vmatpush.msra.mxu0 %v389
      %v391 = vand.u32 %v178, 4294901760
      %v392 = vsub.f32 %v178, %v391
      %393 = vmatpush.msra.mxu0 %v392
      %v394 = vand.u32 %v177, 4294901760
      %v395 = vsub.f32 %v177, %v394
      %396 = vmatpush.msra.mxu0 %v395
      %v397 = vand.u32 %v175, 4294901760
      %v398 = vsub.f32 %v175, %v397
      %399 = vmatmul.f32.gmra.mxu0 %v398
      %v400 = vpop.f32.mrf.mxu0
      %v401 = vadd.f32 %v343, %v400
      %v402 = vand.u32 %v176, 4294901760
      %v403 = vsub.f32 %v176, %v402
      %404 = vmatmul.f32.gmra.mxu0 %v403
      %v405 = vpop.f32.mrf.mxu0
      %v406 = vadd.f32 %v347, %v405
      %407 = vdwg.mxu0
      %v408 = vand.u32 %v192, 4294901760
      %409 = vmatpush.msra.mxu0 %v408
      %v410 = vand.u32 %v191, 4294901760
      %411 = vmatpush.msra.mxu0 %v410
      %v412 = vand.u32 %v190, 4294901760
      %413 = vmatpush.msra.mxu0 %v412
      %v414 = vand.u32 %v189, 4294901760
      %415 = vmatpush.msra.mxu0 %v414
      %v416 = vand.u32 %v188, 4294901760
      %417 = vmatpush.msra.mxu0 %v416
      %v418 = vand.u32 %v187, 4294901760
      %419 = vmatpush.msra.mxu0 %v418
      %v420 = vand.u32 %v186, 4294901760
      %421 = vmatpush.msra.mxu0 %v420
      %v422 = vand.u32 %v185, 4294901760
      %423 = vmatpush.msra.mxu0 %v422
      %v424 = vand.u32 %v184, 4294901760
      %425 = vmatpush.msra.mxu0 %v424
      %v426 = vand.u32 %v183, 4294901760
      %427 = vmatpush.msra.mxu0 %v426
      %v428 = vand.u32 %v182, 4294901760
      %429 = vmatpush.msra.mxu0 %v428
      %v430 = vand.u32 %v181, 4294901760
      %431 = vmatpush.msra.mxu0 %v430
      %v432 = vand.u32 %v180, 4294901760
      %433 = vmatpush.msra.mxu0 %v432
      %v434 = vand.u32 %v179, 4294901760
      %435 = vmatpush.msra.mxu0 %v434
      %v436 = vand.u32 %v178, 4294901760
      %437 = vmatpush.msra.mxu0 %v436
      %v438 = vand.u32 %v177, 4294901760
      %439 = vmatpush.msra.mxu0 %v438
      %v440 = vand.u32 %v175, 4294901760
      %v441 = vsub.f32 %v175, %v440
      %v442 = vand.u32 %v441, 4294901760
      %443 = vmatmul.f32.gmra.mxu0 %v442
      %v444 = vpop.f32.mrf.mxu0
      %v445 = vadd.f32 %v401, %v444
      %v446 = vand.u32 %v176, 4294901760
      %v447 = vsub.f32 %v176, %v446
      %v448 = vand.u32 %v447, 4294901760
      %449 = vmatmul.f32.gmra.mxu0 %v448
      %v450 = vpop.f32.mrf.mxu0
      %v451 = vadd.f32 %v406, %v450
      %452 = vdwg.mxu0
      %v453 = vand.u32 %v192, 4294901760
      %v454 = vsub.f32 %v192, %v453
      %v455 = vand.u32 %v454, 4294901760
      %456 = vmatpush.msra.mxu0 %v455
      %v457 = vand.u32 %v191, 4294901760
      %v458 = vsub.f32 %v191, %v457
      %v459 = vand.u32 %v458, 4294901760
      %460 = vmatpush.msra.mxu0 %v459
      %v461 = vand.u32 %v190, 4294901760
      %v462 = vsub.f32 %v190, %v461
      %v463 = vand.u32 %v462, 4294901760
      %464 = vmatpush.msra.mxu0 %v463
      %v465 = vand.u32 %v189, 4294901760
      %v466 = vsub.f32 %v189, %v465
      %v467 = vand.u32 %v466, 4294901760
      %468 = vmatpush.msra.mxu0 %v467
      %v469 = vand.u32 %v188, 4294901760
      %v470 = vsub.f32 %v188, %v469
      %v471 = vand.u32 %v470, 4294901760
      %472 = vmatpush.msra.mxu0 %v471
      %v473 = vand.u32 %v187, 4294901760
      %v474 = vsub.f32 %v187, %v473
      %v475 = vand.u32 %v474, 4294901760
      %476 = vmatpush.msra.mxu0 %v475
      %v477 = vand.u32 %v186, 4294901760
      %v478 = vsub.f32 %v186, %v477
      %v479 = vand.u32 %v478, 4294901760
      %480 = vmatpush.msra.mxu0 %v479
      %v481 = vand.u32 %v185, 4294901760
      %v482 = vsub.f32 %v185, %v481
      %v483 = vand.u32 %v482, 4294901760
      %484 = vmatpush.msra.mxu0 %v483
      %v485 = vand.u32 %v184, 4294901760
      %v486 = vsub.f32 %v184, %v485
      %v487 = vand.u32 %v486, 4294901760
      %488 = vmatpush.msra.mxu0 %v487
      %v489 = vand.u32 %v183, 4294901760
      %v490 = vsub.f32 %v183, %v489
      %v491 = vand.u32 %v490, 4294901760
      %492 = vmatpush.msra.mxu0 %v491
      %v493 = vand.u32 %v182, 4294901760
      %v494 = vsub.f32 %v182, %v493
      %v495 = vand.u32 %v494, 4294901760
      %496 = vmatpush.msra.mxu0 %v495
      %v497 = vand.u32 %v181, 4294901760
      %v498 = vsub.f32 %v181, %v497
      %v499 = vand.u32 %v498, 4294901760
      %500 = vmatpush.msra.mxu0 %v499
      %v501 = vand.u32 %v180, 4294901760
      %v502 = vsub.f32 %v180, %v501
      %v503 = vand.u32 %v502, 4294901760
      %504 = vmatpush.msra.mxu0 %v503
      %v505 = vand.u32 %v179, 4294901760
      %v506 = vsub.f32 %v179, %v505
      %v507 = vand.u32 %v506, 4294901760
      %508 = vmatpush.msra.mxu0 %v507
      %v509 = vand.u32 %v178, 4294901760
      %v510 = vsub.f32 %v178, %v509
      %v511 = vand.u32 %v510, 4294901760
      %512 = vmatpush.msra.mxu0 %v511
      %v513 = vand.u32 %v177, 4294901760
      %v514 = vsub.f32 %v177, %v513
      %v515 = vand.u32 %v514, 4294901760
      %516 = vmatpush.msra.mxu0 %v515
      %v517 = vand.u32 %v175, 4294901760
      %518 = vmatmul.f32.gmra.mxu0 %v517
      %v519 = vpop.f32.mrf.mxu0
      %v520 = vadd.f32 %v445, %v519
      %v521 = vand.u32 %v176, 4294901760
      %522 = vmatmul.f32.gmra.mxu0 %v521
      %v523 = vpop.f32.mrf.mxu0
      %v524 = vadd.f32 %v451, %v523
      %525 = vdwg.mxu0
      %v526 = vand.u32 %v192, 4294901760
      %527 = vmatpush.msra.mxu0 %v526
      %v528 = vand.u32 %v191, 4294901760
      %529 = vmatpush.msra.mxu0 %v528
      %v530 = vand.u32 %v190, 4294901760
      %531 = vmatpush.msra.mxu0 %v530
      %v532 = vand.u32 %v189, 4294901760
      %533 = vmatpush.msra.mxu0 %v532
      %v534 = vand.u32 %v188, 4294901760
      %535 = vmatpush.msra.mxu0 %v534
      %v536 = vand.u32 %v187, 4294901760
      %537 = vmatpush.msra.mxu0 %v536
      %v538 = vand.u32 %v186, 4294901760
      %539 = vmatpush.msra.mxu0 %v538
      %v540 = vand.u32 %v185, 4294901760
      %541 = vmatpush.msra.mxu0 %v540
      %v542 = vand.u32 %v184, 4294901760
      %543 = vmatpush.msra.mxu0 %v542
      %v544 = vand.u32 %v183, 4294901760
      %545 = vmatpush.msra.mxu0 %v544
      %v546 = vand.u32 %v182, 4294901760
      %547 = vmatpush.msra.mxu0 %v546
      %v548 = vand.u32 %v181, 4294901760
      %549 = vmatpush.msra.mxu0 %v548
      %v550 = vand.u32 %v180, 4294901760
      %551 = vmatpush.msra.mxu0 %v550
      %v552 = vand.u32 %v179, 4294901760
      %553 = vmatpush.msra.mxu0 %v552
      %v554 = vand.u32 %v178, 4294901760
      %555 = vmatpush.msra.mxu0 %v554
      %v556 = vand.u32 %v177, 4294901760
      %557 = vmatpush.msra.mxu0 %v556
      %v558 = vand.u32 %v175, 4294901760
      %559 = vmatmul.f32.gmra.mxu0 %v558
      %v560 = vpop.f32.mrf.mxu0
      %v561 = vadd.f32 %v520, %v560
      %v562 = vand.u32 %v176, 4294901760
      %563 = vmatmul.f32.gmra.mxu0 %v562
      %v564 = vpop.f32.mrf.mxu0
      %v565 = vadd.f32 %v524, %v564
      %566 = vdwg.mxu0
      %vm567 = vcmask 523264
      %568 = vst.msk [vmem:[%s173] sm:$0xff] %vm567, %v561
      %569 = vst.msk [vmem:[%s173 + $0x8] sm:$0xff] %vm567, %v565
      %s570 = smul.u32 2, %s15
      %p571 = scmp.lt.s32.totalorder %s570, 7
      %s572 = scalar_select %p571, %s570, 7
      %s573 = smul.addr %s572, 8
      %s574 = scalar_lea.vmem %s3, %s573
      // Predicated region
      $region33: #{circle_model_v2.1} parent=31 // pred_check
        %p575 = pneg %p101
      $region34: #{circle_model_v2.1} parent=31 // pred_check_branch
        %577 = sbr.rel (%p575) target = $region36
      $region35: #{circle_model_v2.1} parent=31 // pred_region
        %s578 = smul.u32 2, %s15
      $region36: #{circle_model_v2.1} parent=31 // pred_fallthru
        _
    $region32: #{circle_model_v2.1} parent=5 // pred_fallthru
      _
    %p579 = scmp.le.s32.totalorder 2, %s10
    // Predicated region
    $region37: #{circle_model_v2.1} parent=5 // pred_check
      %p580 = pneg %p579
    $region38: #{circle_model_v2.1} parent=5 // pred_check_branch
      %582 = sbr.rel (%p580) target = $region40
    $region39: #{circle_model_v2.1} parent=5 // pred_region
      %s583 = ssub.s32 %s10, 2
      // Predicated region
      $region41: #{circle_model_v2.1} parent=39 // pred_check
        %p584 = pneg %p107
      $region42: #{circle_model_v2.1} parent=39 // pred_check_branch
        %586 = sbr.rel (%p584) target = $region44
      $region43: #{circle_model_v2.1} parent=39 // pred_region
        %s587 = smul.u32 2, %s16
        %p588 = scmp.lt.s32.totalorder %s587, 7
        %s589 = scalar_select %p588, %s587, 7
        %s590 = smul.addr %s589, 8
        %s591 = scalar_lea.vmem %s3, %s590
      $region44: #{circle_model_v2.1} parent=39 // pred_fallthru
        _
    $region40: #{circle_model_v2.1} parent=5 // pred_fallthru
      _
  $region6: #{circle_model_v2.1} parent=0 // loop_footer
    %s14 = sadd.s32 1, %s10
  $region7: #{circle_model_v2.1} parent=0 // loop_footer_branch
    %9 = sbr.rel target = $region3
  $region8: #{circle_model_v2.1} parent=0 // loop_exit
    _

</llo_original>
